<compile_context>
chip_gen: v6e
topology: v6e:2x2x1
jax: 0.10.0
libtpu: 0.0.40
codegen_flags: <defaults>
</compile_context>

<pallas_src>
import jax
import jax.numpy as jnp
import numpy as np
from jax.experimental import pallas as pl
from jax.experimental.pallas import tpu as pltpu

LANE = 128   # vreg lane width
SUB = 8      # vreg sublane height (f32)


def _round_up(n: int, m: int) -> int:
    return (n + m - 1) // m * m


def _threshold_kernel(x_ref, taus_ref, o_ref):
    """One grid step = one threshold group x one spatial tile.

    x_ref    : VMEM (B, hw_tile)          float32
    taus_ref : VMEM (t_tile, 1)           float32
    o_ref    : VMEM (B, t_tile, hw_tile)  float32
    """
    x = x_ref[...]                     # (B, hw_tile), fetched once per step
    taus = taus_ref[...]               # (t_tile, 1)
    # Broadcast compare -> (B, t_tile, hw_tile); single full-slab store.
    o_ref[...] = (x[:, None, :] >= taus[None, :, :]).astype(o_ref.dtype)


def thresholder(x: jax.Array, taus: jax.Array, *,
                max_tile_elems: int | None = None,
                vmem_budget_bytes: int = 12 * (1 << 20)) -> jax.Array:
    """Pallas equivalent of Thresholder.forward.

    x    : (B, 1, H, W) float  -> returns (B, T, H, W) float32
    taus : (T,) float
    """
    B, C, H, W = x.shape
    assert C == 1, "Thresholder expects a single-channel uncertainty map"
    taus = jnp.asarray(taus).reshape(-1)
    T = int(taus.shape[0])
    HW = H * W

    x2 = x.reshape(B, HW).astype(jnp.float32)       # lane-dense flattened map
    taus2 = taus.reshape(T, 1).astype(jnp.float32)  # VMEM column of thresholds

    # Double-buffered VMEM bytes per 128-lane column (x tile + out tile, f32,
    # sublane padding included).
    def per_col_bytes(t: int) -> int:
        return 2 * 4 * (_round_up(B, SUB) + B * _round_up(t, SUB)) * LANE

    # --- threshold-group size (second-minor axis of the output block) -------
    t_tile = T
    if per_col_bytes(T) > vmem_budget_bytes:
        max_t = vmem_budget_bytes // (2 * 4 * LANE) - _round_up(B, SUB)
        max_t = max_t // max(B, 1)
        t_tile = min(T, max(SUB, (max_t // SUB) * SUB))
        # TODO(synk): for extreme B (x tile alone over budget) add a batch
        # grid axis as well; not needed for realistic uncertainty-map shapes.
    n_t = pl.cdiv(T, t_tile)

    # --- spatial tile size (lane axis) ---------------------------------------
    total_cols = pl.cdiv(HW, LANE)
    max_cols_vmem = max(1, vmem_budget_bytes // per_col_bytes(t_tile))
    # Keep >= ~4 spatial steps so both v7x TensorCores get work and the output
    # DMA overlaps with compute; otherwise take the biggest tile VMEM allows.
    tile_cols = min(total_cols, max_cols_vmem, max(1, pl.cdiv(total_cols, 4)))
    if max_tile_elems is not None:
        tile_cols = min(tile_cols, max(1, max_tile_elems // LANE))
    hw_tile = tile_cols * LANE
    n_hw = pl.cdiv(HW, hw_tile)

    grid = (n_t, n_hw)

    vmem_limit = int(min(max(vmem_budget_bytes + (2 << 20), 16 << 20), 32 << 20))

    out = pl.pallas_call(
        _threshold_kernel,
        out_shape=jax.ShapeDtypeStruct((B, T, HW), jnp.float32),
        grid=grid,
        in_specs=[
            # one spatial tile of the flattened map (same tile for every t-group)
            pl.BlockSpec((B, hw_tile), lambda ti, j: (0, j)),
            # one group of thresholds
            pl.BlockSpec((t_tile, 1), lambda ti, j: (ti, 0)),
        ],
        # one (B, t_tile, hw_tile) output slab per step (lane-dense last dim)
        out_specs=pl.BlockSpec((B, t_tile, hw_tile), lambda ti, j: (0, ti, j)),
        compiler_params=pltpu.CompilerParams(
            dimension_semantics=("parallel", "parallel"),
            vmem_limit_bytes=vmem_limit,
        ),
        cost_estimate=pl.CostEstimate(
            flops=B * T * HW,
            transcendentals=0,
            bytes_accessed=4 * B * HW * n_t + 4 * B * T * HW,
        ),
    )(x2, taus2)

    # (B, T, H*W) -> (B, T, H, W) is a free, contiguous reshape (no copy/slice).
    return out.reshape(B, T, H, W)


if __name__ == "__main__":
    key = jax.random.PRNGKey(0)
    k1, k2, k3 = jax.random.split(key, 3)

    # --- small test (module's expected layout) -------------------------------
    B, C, H, W, T = 2, 1, 16, 16, 4
    x = jax.random.uniform(k1, (B, C, H, W), dtype=jnp.float32)
    taus = jnp.array([0.2, 0.4, 0.6, 0.8], dtype=jnp.float32)

    out = jax.block_until_ready(thresholder(x, taus))
    ref = (x >= taus.reshape(1, T, 1, 1)).astype(jnp.float32)
    assert out.shape == (B, T, H, W)
    assert out.dtype == jnp.float32
    assert np.array_equal(np.asarray(out), np.asarray(ref))

    # --- multi-tile spatial grid (odd B and T, 4 spatial steps) --------------
    B2, H2, W2, T2 = 3, 32, 32, 3
    x2 = jax.random.uniform(k2, (B2, 1, H2, W2), dtype=jnp.float32)
    taus2 = jnp.array([0.25, 0.5, 0.75], dtype=jnp.float32)

    out2 = jax.block_until_ready(thresholder(x2, taus2, max_tile_elems=256))
    ref2 = (x2 >= taus2.reshape(1, T2, 1, 1)).astype(jnp.float32)
    assert out2.shape == (B2, T2, H2, W2)
    assert np.array_equal(np.asarray(out2), np.asarray(ref2))

    # --- forced threshold-group split (partial t block, tiny VMEM budget) ----
    B3, H3, W3, T3 = 2, 16, 16, 11
    x3 = jax.random.uniform(k3, (B3, 1, H3, W3), dtype=jnp.float32)
    taus3 = jnp.linspace(0.05, 0.95, T3, dtype=jnp.float32)

    out3 = jax.block_until_ready(
        thresholder(x3, taus3, vmem_budget_bytes=20_000))
    ref3 = (x3 >= taus3.reshape(1, T3, 1, 1)).astype(jnp.float32)
    assert out3.shape == (B3, T3, H3, W3)
    assert np.array_equal(np.asarray(out3), np.asarray(ref3))

    print("KERNEL_OK")
</pallas_src>

<mosaic_0001>
module attributes {stable_mosaic.version = 11 : i64} {
  func.func @_threshold_kernel(%arg0: i32, %arg1: i32, %arg2: memref<2x128xf32, #tpu.memory_space<vmem>>, %arg3: memref<4x1xf32, #tpu.memory_space<vmem>>, %arg4: memref<2x4x128xf32, #tpu.memory_space<vmem>>) attributes {dimension_semantics = [#tpu.dimension_semantics<parallel>, #tpu.dimension_semantics<parallel>], iteration_bounds = array<i64: 1, 2>, scalar_prefetch = 0 : i64, scratch_operands = 0 : i64, tpu.core_type = #tpu.core_type<tc>, window_params = [{transform_indices = @transform_0, window_bounds = array<i64: 2, 128>}, {transform_indices = @transform_1, window_bounds = array<i64: 4, 1>}, {transform_indices = @transform_2, window_bounds = array<i64: 2, 4, 128>}]} {
    %c0 = arith.constant 0 : index
    %c0_0 = arith.constant 0 : index
    %0 = vector.load %arg2[%c0, %c0_0] : memref<2x128xf32, #tpu.memory_space<vmem>>, vector<2x128xf32>
    %c0_1 = arith.constant 0 : index
    %c0_2 = arith.constant 0 : index
    %1 = vector.load %arg3[%c0_1, %c0_2] : memref<4x1xf32, #tpu.memory_space<vmem>>, vector<4x1xf32>
    %2 = vector.shape_cast %0 : vector<2x128xf32> to vector<2x1x128xf32>
    %3 = vector.shape_cast %1 : vector<4x1xf32> to vector<1x4x1xf32>
    %4 = vector.broadcast %2 : vector<2x1x128xf32> to vector<2x4x128xf32>
    %5 = vector.broadcast %3 : vector<1x4x1xf32> to vector<2x4x128xf32>
    %6 = arith.cmpf oge, %4, %5 : vector<2x4x128xf32>
    %7 = arith.extui %6 : vector<2x4x128xi1> to vector<2x4x128xi32>
    %8 = arith.sitofp %7 : vector<2x4x128xi32> to vector<2x4x128xf32>
    %c0_3 = arith.constant 0 : index
    %c0_4 = arith.constant 0 : index
    %c0_5 = arith.constant 0 : index
    %9 = vector.load %arg4[%c0_3, %c0_4, %c0_5] : memref<2x4x128xf32, #tpu.memory_space<vmem>>, vector<2x4x128xf32>
    tpu.vector_store %arg4[%c0_3, %c0_4, %c0_5], %8 {strides = array<i32>} : memref<2x4x128xf32, #tpu.memory_space<vmem>>, vector<2x4x128xf32>,
    return
  }
  func.func @transform_0(%arg0: i32, %arg1: i32) -> (i32, i32) {
    %c0_i32 = arith.constant 0 : i32
    %c0_i32_0 = arith.constant 0 : i32
    return %c0_i32, %arg1 : i32, i32
  }
  func.func @transform_1(%arg0: i32, %arg1: i32) -> (i32, i32) {
    %c0_i32 = arith.constant 0 : i32
    %c0_i32_0 = arith.constant 0 : i32
    return %arg0, %c0_i32 : i32, i32
  }
  func.func @transform_2(%arg0: i32, %arg1: i32) -> (i32, i32, i32) {
    %c0_i32 = arith.constant 0 : i32
    %c0_i32_0 = arith.constant 0 : i32
    return %c0_i32, %arg0, %arg1 : i32, i32, i32
  }
}

</mosaic_0001>

<llo_original>
// kernel: tpu_custom_call.1
$region0: #{tpu_custom_call.1}
  #allocation0 [shape = 'u32[]', space=smem, size = 0x4, offset = 0x4, fixed_abs, tag = 'smem constant byte address 0x4 - core index']
  #allocation1 [shape = 'u32[144,128]{1,0:T(1,128)}', space=vmem, size = 0x12000, scoped, tag = 'internal scratch']
  %s0 = inlined_call_operand.vmem [shape: f32[2,256], index: 0, kind: input, shape index: {}]
  %s1 = inlined_call_operand.vmem [shape: f32[4,1], index: 1, kind: input, shape index: {}]
  %s2 = inlined_call_operand.hbm [shape: f32[2,4,256], index: 2, kind: output, shape index: {}]
  %s3 = sld [smem:[#allocation0]]
  $region41: #{tpu_custom_call.1} parent=0
    _
  %s5 = ssub.s32 1, %s3
  %s6 = scalar_select 0, %s5, %s3
  $region1: #{tpu_custom_call.1} parent=0
    #allocation2 [shape = 'u8[8192]{0}', space=vmem, size = 0x2000, scoped, tag = 'output window, operand 0']
    #allocation3 [shape = 's32[2]{0}', space=sflag, size = 0x8, scoped, tag = 'scoped memory for tpu_custom_call.1']
    %7 = vsyncpa [#allocation3], 0
    %s8 = scalar_lea.sflag [#allocation3], 1
    %9 = vsyncpa %s8, 0
    loop: start=0, step=1, limit=4
    $region2: #{tpu_custom_call.1} parent=1 // loop_pre_header
      _
    $region3: #{tpu_custom_call.1} parent=1 // loop_header
      %s11 = sphi 0, %s15
      %p12 = scmp.ge.s32.totalorder %s11, 4
      %s18 = sphi 0, %s30
      %s19 = sphi 0, %s26
      %s20 = sphi 0, %s18
      %s21 = sphi 0, %s19
      %s22 = sphi 0, %s20
      %s23 = sphi 0, %s21
      %s33 = sphi 0, %s35
      %s36 = sphi 0, %s33
      %s37 = sphi 0, %s36
      %s53 = sphi 0, %s37
      %s59 = sphi 0, %s61
      %s62 = sphi 0, %s59
      %s63 = sphi 0, %s62
      %s79 = sphi 0, %s63
      %s87 = sphi 0, %s89
      %s90 = sphi 0, %s87
      %s91 = sphi 0, %s90
      %s107 = sphi 0, %s91
    $region4: #{tpu_custom_call.1} parent=1 // loop_header_branch
      %14 = sbr.rel (%p12) target = $region8
    $region5: #{tpu_custom_call.1} parent=1 // loop_body
      %s16 = ssub.s32 %s11, 1
      %s17 = ssub.s32 %s11, 2
      %s24 = sadd.s32 1, %s19
      %p25 = scmp.ge.s32.totalorder %s24, 2
      %s26 = scalar_select %p25, 0, %s24
      %s27 = sadd.s32 1, %s18
      %s28 = scalar_select %p25, %s27, %s18
      %p29 = scmp.ge.s32.totalorder %s28, 1
      %s30 = scalar_select %p29, 0, %s28
      %s31 = ssub.s32 %s19, %s26
      %p32 = scmp.eq.s32.totalorder %s31, 0
      %s34 = sadd.s32 %s33, 1
      %s35 = scalar_select %p32, %s33, %s34
      %p38 = pneg %p32
      %p39 = scmp.eq.s32.totalorder %s11, 1
      %p40 = por %p38, %p39
      %p41 = scmp.ne.s32.totalorder %s33, %s36
      %p42 = scmp.eq.s32.totalorder %s11, 0
      %p43 = por %p41, %p42
      %p44 = scmp.ne.s32.totalorder %s33, %s36
      %p45 = scmp.eq.s32.totalorder %s16, 1
      %p46 = por %p44, %p45
      %p47 = scmp.ne.s32.totalorder %s36, %s37
      %p48 = scmp.eq.s32.totalorder %s16, 0
      %p49 = por %p47, %p48
      %p50 = scmp.ne.s32.totalorder %s36, %s37
      %p51 = scmp.eq.s32.totalorder %s17, 1
      %p52 = por %p50, %p51
      %p54 = scmp.ne.s32.totalorder %s37, %s53
      %p55 = scmp.eq.s32.totalorder %s17, 0
      %p56 = por %p54, %p55
      %s57 = ssub.s32 %s18, %s30
      %p58 = scmp.eq.s32.totalorder %s57, 0
      %s60 = sadd.s32 %s59, 1
      %s61 = scalar_select %p58, %s59, %s60
      %p64 = pneg %p58
      %p65 = scmp.eq.s32.totalorder %s11, 1
      %p66 = por %p64, %p65
      %p67 = scmp.ne.s32.totalorder %s59, %s62
      %p68 = scmp.eq.s32.totalorder %s11, 0
      %p69 = por %p67, %p68
      %p70 = scmp.ne.s32.totalorder %s59, %s62
      %p71 = scmp.eq.s32.totalorder %s16, 1
      %p72 = por %p70, %p71
      %p73 = scmp.ne.s32.totalorder %s62, %s63
      %p74 = scmp.eq.s32.totalorder %s16, 0
      %p75 = por %p73, %p74
      %p76 = scmp.ne.s32.totalorder %s62, %s63
      %p77 = scmp.eq.s32.totalorder %s17, 1
      %p78 = por %p76, %p77
      %p80 = scmp.ne.s32.totalorder %s63, %s79
      %p81 = scmp.eq.s32.totalorder %s17, 0
      %p82 = por %p80, %p81
      %s83 = ssub.s32 %s18, %s30
      %s84 = ssub.s32 %s19, %s26
      %s85 = sor.u32 %s83, %s84
      %p86 = scmp.eq.s32.totalorder %s85, 0
      %s88 = sadd.s32 %s87, 1
      %s89 = scalar_select %p86, %s87, %s88
      %p92 = pneg %p86
      %p93 = scmp.eq.s32.totalorder %s11, 1
      %p94 = por %p92, %p93
      %p95 = scmp.ne.s32.totalorder %s87, %s90
      %p96 = scmp.eq.s32.totalorder %s11, 0
      %p97 = por %p95, %p96
      %p98 = scmp.ne.s32.totalorder %s87, %s90
      %p99 = scmp.eq.s32.totalorder %s16, 1
      %p100 = por %p98, %p99
      %p101 = scmp.ne.s32.totalorder %s90, %s91
      %p102 = scmp.eq.s32.totalorder %s16, 0
      %p103 = por %p101, %p102
      %p104 = scmp.ne.s32.totalorder %s90, %s91
      %p105 = scmp.eq.s32.totalorder %s17, 1
      %p106 = por %p104, %p105
      %p108 = scmp.ne.s32.totalorder %s91, %s107
      %p109 = scmp.eq.s32.totalorder %s17, 0
      %p110 = por %p108, %p109
      %p111 = scmp.le.s32.totalorder 1, %s11
      %p112 = scmp.lt.s32.totalorder %s11, 3
      %p113 = pnand %p111, %p112
      %p114 = pneg %p113
      // Predicated region
      $region9: #{tpu_custom_call.1} parent=5 // pred_check
        _
      $region10: #{tpu_custom_call.1} parent=5 // pred_check_branch
        %116 = sbr.rel (%p113) target = $region12
      $region11: #{tpu_custom_call.1} parent=5 // pred_region
        %s117 = ssub.s32 %s11, 1
        // Predicated region
        $region13: #{tpu_custom_call.1} parent=11 // pred_check
          %p118 = pneg %p75
        $region14: #{tpu_custom_call.1} parent=11 // pred_check_branch
          %120 = sbr.rel (%p118) target = $region16
        $region15: #{tpu_custom_call.1} parent=11 // pred_region
          %p121 = scmp.lt.s32.totalorder %s20, 0
          %s122 = scalar_select %p121, %s20, 0
          %s123 = smul.addr %s122, 4
          %s124 = scalar_lea.vmem %s1, %s123
        $region16: #{tpu_custom_call.1} parent=11 // pred_fallthru
          _
      $region12: #{tpu_custom_call.1} parent=5 // pred_fallthru
        _
      %p125 = scmp.lt.s32.totalorder %s11, 2
      // Predicated region
      $region17: #{tpu_custom_call.1} parent=5 // pred_check
        %p126 = pneg %p125
      $region18: #{tpu_custom_call.1} parent=5 // pred_check_branch
        %128 = sbr.rel (%p126) target = $region20
      $region19: #{tpu_custom_call.1} parent=5 // pred_region
        // Predicated region
        $region21: #{tpu_custom_call.1} parent=19 // pred_check
          %p129 = pneg %p43
        $region22: #{tpu_custom_call.1} parent=19 // pred_check_branch
          %131 = sbr.rel (%p129) target = $region24
        $region23: #{tpu_custom_call.1} parent=19 // pred_region
          %p132 = scmp.lt.s32.totalorder %s19, 1
          %s133 = scalar_select %p132, %s19, 1
          %s134 = smul.addr %s133, 2
          %s135 = scalar_lea.vmem %s0, %s134
        $region24: #{tpu_custom_call.1} parent=19 // pred_fallthru
          _
      $region20: #{tpu_custom_call.1} parent=5 // pred_fallthru
        _
      %p136 = scmp.le.s32.totalorder 1, %s11
      %p137 = scmp.lt.s32.totalorder %s11, 3
      %p138 = pnand %p136, %p137
      %p139 = pneg %p138
      // Predicated region
      $region25: #{tpu_custom_call.1} parent=5 // pred_check
        _
      $region26: #{tpu_custom_call.1} parent=5 // pred_check_branch
        %141 = sbr.rel (%p138) target = $region28
      $region27: #{tpu_custom_call.1} parent=5 // pred_region
        %s142 = ssub.s32 %s11, 1
        %p143 = scmp.lt.s32.totalorder %s21, 1
        %s144 = scalar_select %p143, %s21, 1
        %s145 = smul.addr %s144, 2
        %s146 = scalar_lea.vmem %s0, %s145
        %p147 = pneg %p49
        %p148 = pneg %p46
        %p149 = scmp.lt.s32.totalorder %s20, 0
        %s150 = scalar_select %p149, %s20, 0
        %s151 = smul.addr %s150, 4
        %s152 = scalar_lea.vmem %s1, %s151
        %p153 = pneg %p75
        %p154 = pneg %p72
        %p155 = pneg %p103
        %p156 = pneg %p100
        %s157 = sand.u32 %s90, 1
        %s158 = scalar_lea.sflag [#allocation3], %s157
        %s159 = sand.u32 %s90, 1
        %s160 = smul.addr %s159, 8
        %s161 = scalar_lea.vmem [#allocation2], %s160
        %p162 = scmp.lt.s32.totalorder %s21, 1
        %s163 = scalar_select %p162, %s21, 1
        %s164 = smul.addr %s163, 2
        %s165 = scalar_lea.vmem %s0, %s164
        %p166 = scmp.lt.s32.totalorder %s20, 0
        %s167 = scalar_select %p166, %s20, 0
        %s168 = smul.addr %s167, 4
        %s169 = scalar_lea.vmem %s1, %s168
        %v170 = vld [vmem:[%s165] sm:$0x3]
        %v171 = vld [vmem:[%s169] sm:$0xf]
        %v174 = vunpack.c.l.s4 1966171168
        %v175 = vunpack.c.0.s8 %v174
        %v176 = vlaneseq
        %v177 = vshrl.u32 %v176, 7
        %v178 = vsub.s32 %v175, %v177
        %v179 = vrot.slane %v170, %v178
        %v180 = vcombine.high %v179, %v179
        %v182 = vunpack.c.l.s4 1966171168
        %v183 = vunpack.c.0.s8 %v182
        %v184 = vlaneseq
        %v185 = vshrl.u32 %v184, 7
        %v186 = vsub.s32 %v183, %v185
        %v187 = vrot.slane %v179, %v186
        %v189 = vunpack.c.l.s4 1966171168
        %v190 = vunpack.c.0.s8 %v189
        %v191 = vlaneseq
        %v192 = vshrl.u32 %v191, 7
        %v193 = vsub.s32 %v190, %v192
        %v194 = vrot.slane %v180, %v193
        %v195 = vlaneseq
        %v196 = vshrl.u32 %v195, 7
        %v197 = vsub.s32 0, %v196
        %v198 = vrot.slane %v187, %v197
        %v199 = vlaneseq
        %v200 = vshrl.u32 %v199, 7
        %v201 = vsub.s32 0, %v200
        %v202 = vrot.slane %v194, %v201
        %206 = vset.pattern.permute.xlu0 0
        %207 = vperm.xlu0 %206, %v171
        %v208 = vpop.permute.xlu0 %207
        %vm210 = vcmp.ge.f32.partialorder %v198, %v208
        %vm211 = vcmp.ge.f32.partialorder %v202, %v208
        %v212 = vsel %vm210, 1, 0
        %v213 = vsel %vm211, 1, 0
        %v214 = vcvt.s32.f32 %v212
        %v215 = vcvt.s32.f32 %v213
        %216 = vst [vmem:[%s161] sm:$0xf] %v214
        %217 = vst [vmem:[%s161 + $0x4] sm:$0xf] %v215
        %s218 = sand.u32 %s90, 1
        %s219 = scalar_lea.sflag [#allocation3], %s218
        %s220 = sand.u32 %s90, 1
        %s221 = smul.addr %s220, 8
        %s222 = scalar_lea.vmem [#allocation2], %s221
        // Predicated region
        $region29: #{tpu_custom_call.1} parent=27 // pred_check
          %p223 = pneg %p100
        $region30: #{tpu_custom_call.1} parent=27 // pred_check_branch
          %225 = sbr.rel (%p223) target = $region32
        $region31: #{tpu_custom_call.1} parent=27 // pred_region
          %s227 = ssub.s32 128, 128
          %228 = vsyncadd %s219, %s227
          %s229 = smul.addr %s20, 2
          %s230 = sadd.s32 %s21, %s229
          %s231 = smul.addr %s230, 64
          %s232 = scalar_lea.hbm %s2, %s231
          %s233 = sshll.u32 %s222, 4
          %s234 = int_to_ptr.vmem [resolvable:$true] %s233
          %239 = dma.vmem_to_hbm [thread:$0]  %s234, 128, %s232, %s219, 64, 128, 4
        $region32: #{tpu_custom_call.1} parent=27 // pred_fallthru
          _
      $region28: #{tpu_custom_call.1} parent=5 // pred_fallthru
        _
      %p240 = scmp.le.s32.totalorder 2, %s11
      // Predicated region
      $region33: #{tpu_custom_call.1} parent=5 // pred_check
        %p241 = pneg %p240
      $region34: #{tpu_custom_call.1} parent=5 // pred_check_branch
        %243 = sbr.rel (%p241) target = $region36
      $region35: #{tpu_custom_call.1} parent=5 // pred_region
        %s244 = ssub.s32 %s11, 2
        // Predicated region
        $region37: #{tpu_custom_call.1} parent=35 // pred_check
          %p245 = pneg %p106
        $region38: #{tpu_custom_call.1} parent=35 // pred_check_branch
          %247 = sbr.rel (%p245) target = $region40
        $region39: #{tpu_custom_call.1} parent=35 // pred_region
          %s248 = sand.u32 %s91, 1
          %s249 = scalar_lea.sflag [#allocation3], %s248
          %s250 = sand.u32 %s91, 1
          %s251 = smul.addr %s250, 8
          %s252 = scalar_lea.vmem [#allocation2], %s251
          %253 = dma.done %s249, 128
        $region40: #{tpu_custom_call.1} parent=35 // pred_fallthru
          _
      $region36: #{tpu_custom_call.1} parent=5 // pred_fallthru
        _
    $region6: #{tpu_custom_call.1} parent=1 // loop_footer
      %s15 = sadd.s32 1, %s11
    $region7: #{tpu_custom_call.1} parent=1 // loop_footer_branch
      %10 = sbr.rel target = $region3
    $region8: #{tpu_custom_call.1} parent=1 // loop_exit
      _
    %254 = vsyncpa [#allocation3], 1
    %s255 = scalar_lea.sflag [#allocation3], 1
    %256 = vsyncpa %s255, 1

</llo_original>
